<compile_context>
chip_gen: v5e
topology: v5e:2x2
jax: 0.10.0
libtpu: 0.0.40
codegen_flags: <defaults>
</compile_context>

<pallas_src>
import functools

import jax
import jax.numpy as jnp
from jax.experimental import pallas as pl
from jax.experimental.pallas import tpu as pltpu


def _round_up(v, m):
    return -(-v // m) * m


def _vmem_spec():
    # whole array resident in VMEM (used for the tiny gated path)
    return pl.BlockSpec(memory_space=pltpu.MemorySpace.VMEM)


# ---------------------------------------------------------------------------
# Kernels
# ---------------------------------------------------------------------------
def _bilinear_kernel(x_ref, c_ref, xe_ref, ce_ref, w_ref, o_ref):
    """One fused matmul per 128-lane output block.

    x_ref : (Bp, X+1)   = [x | 1]
    c_ref : (Bp, C+1)   = [c | 1]
    xe_ref: (X+1, Kf)   0/1 expansion:  (x @ xe)[b, j*(X+1)+k] = x_aug[b, k]
    ce_ref: (C+1, Kf)   0/1 expansion:  (c @ ce)[b, j*(X+1)+k] = c_aug[b, j]
    w_ref : (Kf, 128)   fused weight block (Wlinear.w, Wlinear.b, blinear.w, blinear.b)
    o_ref : (Bp, 128)
    """
    xe = jnp.dot(x_ref[...], xe_ref[...], preferred_element_type=jnp.float32)
    ce = jnp.dot(c_ref[...], ce_ref[...], preferred_element_type=jnp.float32)
    f = ce * xe                      # f[b, m] = c_aug[b, j(m)] * x_aug[b, k(m)]
    o_ref[...] = jnp.tanh(
        jnp.dot(f, w_ref[...], preferred_element_type=jnp.float32)
    ).astype(o_ref.dtype)


def _gated_kernel(size_p, xc_ref, w_ref, b_ref, o_ref):
    """Single matmul against a block-diagonal [xW | cW] weight, then
    tanh(left half) * sigmoid(right half)."""
    h = jnp.dot(xc_ref[...], w_ref[...],
                preferred_element_type=jnp.float32) + b_ref[...]
    o_ref[...] = (jnp.tanh(h[:, :size_p]) *
                  jax.nn.sigmoid(h[:, size_p:])).astype(o_ref.dtype)


# ---------------------------------------------------------------------------
# Module
# ---------------------------------------------------------------------------
class FastWeightLayer:
    """JAX/Pallas port of the PyTorch FastWeightLayer (activation = tanh)."""

    def __init__(self, size, x_size, c_size, option, key):
        self.size, self.x_size, self.c_size, self.option = size, x_size, c_size, option
        self.size_p = _round_up(size, 128)        # lane-dense output
        pad_n = self.size_p - size
        k0, k1 = jax.random.split(key, 2)

        def linear_params(k, out_f, in_f):
            # deterministic nn.Linear-style init: U(-1/sqrt(in_f), 1/sqrt(in_f))
            lim = 1.0 / float(in_f) ** 0.5
            kw, kb = jax.random.split(k)
            w = jax.random.uniform(kw, (out_f, in_f), jnp.float32, -lim, lim)
            b = jax.random.uniform(kb, (out_f,), jnp.float32, -lim, lim)
            return w, b

        if option == 'bilinear':
            self.Ww, self.Wb = linear_params(k0, size * x_size, c_size)  # Wlinear
            self.bw, self.bb = linear_params(k1, size, c_size)           # blinear
            # Rearranged / fused weight so the whole forward is one dot + tanh:
            #   Wr[j,k,n]     = Ww[k*size+n, j]
            #   row m=j*(X+1)+k of Wfull:
            #     j<C,k<X -> Wr[j,k,:] ; j=C,k<X -> Wb[k*size:..] ; j<C,k=X -> bw[:,j] ;
            #     j=C,k=X -> bb
            Wr = self.Ww.reshape(x_size, size, c_size).transpose(2, 0, 1)  # (C,X,S)
            Wbias_r = self.Wb.reshape(x_size, size)                        # (X,S)
            big = jnp.zeros((c_size + 1, x_size + 1, size), jnp.float32)
            big = big.at[:c_size, :x_size, :].set(Wr)
            big = big.at[c_size, :x_size, :].set(Wbias_r)
            big = big.at[:c_size, x_size, :].set(self.bw.T)
            big = big.at[c_size, x_size, :].set(self.bb)
            Wfull = big.reshape((c_size + 1) * (x_size + 1), size)         # (Kf, S)
            self.Wfused = jnp.pad(Wfull, ((0, 0), (0, pad_n)))             # (Kf, Sp)
            # 0/1 expansion matrices (tiny, host-built)
            self.c_expand = jnp.kron(jnp.eye(c_size + 1, dtype=jnp.float32),
                                     jnp.ones((1, x_size + 1), jnp.float32))
            self.x_expand = jnp.tile(jnp.eye(x_size + 1, dtype=jnp.float32),
                                     (1, c_size + 1))
        elif option == 'gated':
            self.xw, self.xb_ = linear_params(k0, size, x_size)  # xlinear
            self.cw, self.cb_ = linear_params(k1, size, c_size)  # clinear
            xwT_p = jnp.pad(self.xw.T, ((0, 0), (0, pad_n)))     # (X, Sp)
            cwT_p = jnp.pad(self.cw.T, ((0, 0), (0, pad_n)))     # (C, Sp)
            self.Wcat = jnp.concatenate([
                jnp.concatenate(
                    [xwT_p, jnp.zeros((x_size, self.size_p), jnp.float32)], axis=1),
                jnp.concatenate(
                    [jnp.zeros((c_size, self.size_p), jnp.float32), cwT_p], axis=1)],
                axis=0)                                           # (X+C, 2*Sp)
            self.bcat = jnp.concatenate([
                jnp.pad(self.xb_, (0, pad_n)),
                jnp.pad(self.cb_, (0, pad_n))]).reshape(1, 2 * self.size_p)
        else:
            raise NotImplementedError(option)

        # jit once; weights are captured as device-resident constants.
        self._forward = jax.jit(self._build_forward())

    # ------------------------------------------------------------------
    def _build_forward(self):
        size, size_p = self.size, self.size_p
        x_size, c_size = self.x_size, self.c_size

        if self.option == 'bilinear':
            wf, xexp, cexp = self.Wfused, self.x_expand, self.c_expand
            kf = wf.shape[0]

            def fwd(x, c):
                b = x.shape[0]
                b_p = _round_up(b, 8)                       # f32 sublane multiple
                ones = jnp.ones((b, 1), jnp.float32)
                x_aug = jnp.concatenate([x.astype(jnp.float32), ones], axis=1)
                c_aug = jnp.concatenate([c.astype(jnp.float32), ones], axis=1)
                x_p = jnp.pad(x_aug, ((0, b_p - b), (0, 0)))
                c_p = jnp.pad(c_aug, ((0, b_p - b), (0, 0)))
                out = pl.pallas_call(
                    _bilinear_kernel,
                    out_shape=jax.ShapeDtypeStruct((b_p, size_p), jnp.float32),
                    grid=(size_p // 128,),
                    in_specs=[
                        pl.BlockSpec((b_p, x_size + 1), lambda n: (0, 0)),
                        pl.BlockSpec((b_p, c_size + 1), lambda n: (0, 0)),
                        pl.BlockSpec((x_size + 1, kf), lambda n: (0, 0)),
                        pl.BlockSpec((c_size + 1, kf), lambda n: (0, 0)),
                        pl.BlockSpec((kf, 128), lambda n: (0, n)),
                    ],
                    out_specs=pl.BlockSpec((b_p, 128), lambda n: (0, n)),
                    compiler_params=pltpu.CompilerParams(
                        dimension_semantics=("parallel",)),
                )(x_p, c_p, xexp, cexp, wf)
                return out[:b, :size]

            return fwd

        else:  # gated
            wc, bc = self.Wcat, self.bcat
            kernel = functools.partial(_gated_kernel, size_p)

            def fwd(x, c):
                b = x.shape[0]
                b_p = _round_up(b, 8)
                xc = jnp.concatenate(
                    [x.astype(jnp.float32), c.astype(jnp.float32)], axis=1)
                xc_p = jnp.pad(xc, ((0, b_p - b), (0, 0)))
                out = pl.pallas_call(
                    kernel,
                    out_shape=jax.ShapeDtypeStruct((b_p, size_p), jnp.float32),
                    in_specs=[_vmem_spec()] * 3,
                    out_specs=_vmem_spec(),
                )(xc_p, wc, bc)
                return out[:b, :size]

            return fwd

    # ------------------------------------------------------------------
    def __call__(self, x, c):
        return self._forward(x, c)


# ---- pure-JAX references mirroring the PyTorch forward --------------------
def _ref_bilinear(layer, x, c):
    B = x.shape[0]
    Wflat = c @ layer.Ww.T + layer.Wb                      # (B, size*x_size)
    W = Wflat.reshape(B, layer.x_size, layer.size)         # (B, x_size, size)
    xw = jnp.einsum('bk,bks->bs', x, W)
    bias = c @ layer.bw.T + layer.bb
    return jnp.tanh(xw + bias)


def _ref_gated(layer, x, c):
    xp = jnp.tanh(x @ layer.xw.T + layer.xb_)
    cp = jax.nn.sigmoid(c @ layer.cw.T + layer.cb_)
    return xp * cp


if __name__ == "__main__":
    B, X_SIZE, C_SIZE, SIZE = 4, 16, 8, 32

    key = jax.random.PRNGKey(0)
    kx, kc, kp_bi, kp_g = jax.random.split(key, 4)
    x = jax.random.normal(kx, (B, X_SIZE), jnp.float32)
    c = jax.random.normal(kc, (B, C_SIZE), jnp.float32)

    # bilinear option
    layer_bi = FastWeightLayer(SIZE, X_SIZE, C_SIZE, 'bilinear', kp_bi)
    out_bi = jax.block_until_ready(layer_bi(x, c))
    ref_bi = _ref_bilinear(layer_bi, x, c)
    assert out_bi.shape == (B, SIZE)
    assert jnp.allclose(out_bi, ref_bi, atol=2e-3, rtol=2e-3), "bilinear mismatch"

    # gated option
    layer_g = FastWeightLayer(SIZE, X_SIZE, C_SIZE, 'gated', kp_g)
    out_g = jax.block_until_ready(layer_g(x, c))
    ref_g = _ref_gated(layer_g, x, c)
    assert out_g.shape == (B, SIZE)
    assert jnp.allclose(out_g, ref_g, atol=2e-3, rtol=2e-3), "gated mismatch"

    print("KERNEL_OK")
</pallas_src>

<mosaic_0001>
module attributes {stable_mosaic.version = 11 : i64} {
  func.func @_bilinear_kernel(%arg0: i32, %arg1: memref<8x17xf32, #tpu.memory_space<vmem>>, %arg2: memref<8x9xf32, #tpu.memory_space<vmem>>, %arg3: memref<17x153xf32, #tpu.memory_space<vmem>>, %arg4: memref<9x153xf32, #tpu.memory_space<vmem>>, %arg5: memref<153x128xf32, #tpu.memory_space<vmem>>, %arg6: memref<8x128xf32, #tpu.memory_space<vmem>>) attributes {dimension_semantics = [#tpu.dimension_semantics<parallel>], iteration_bounds = array<i64: 1>, scalar_prefetch = 0 : i64, scratch_operands = 0 : i64, tpu.core_type = #tpu.core_type<tc>, window_params = [{pipeline_mode = #tpu.pipeline_mode<synchronous>, transform_indices = @transform_0, window_bounds = array<i64: 8, 17>}, {pipeline_mode = #tpu.pipeline_mode<synchronous>, transform_indices = @transform_1, window_bounds = array<i64: 8, 9>}, {pipeline_mode = #tpu.pipeline_mode<synchronous>, transform_indices = @transform_2, window_bounds = array<i64: 17, 153>}, {pipeline_mode = #tpu.pipeline_mode<synchronous>, transform_indices = @transform_3, window_bounds = array<i64: 9, 153>}, {transform_indices = @transform_4, window_bounds = array<i64: 153, 128>}, {transform_indices = @transform_5, window_bounds = array<i64: 8, 128>}]} {
    %c0 = arith.constant 0 : index
    %c0_0 = arith.constant 0 : index
    %0 = vector.load %arg1[%c0, %c0_0] : memref<8x17xf32, #tpu.memory_space<vmem>>, vector<8x17xf32>
    %c0_1 = arith.constant 0 : index
    %c0_2 = arith.constant 0 : index
    %1 = vector.load %arg3[%c0_1, %c0_2] : memref<17x153xf32, #tpu.memory_space<vmem>>, vector<17x153xf32>
    %cst = arith.constant dense<0.000000e+00> : vector<8x153xf32>
    %2 = tpu.matmul %0, %1, %cst {dimension_numbers = #tpu.dot_dimension_numbers<[1], [0], [0], [1], [0, 0, 1, 1], [], []>} : vector<8x17xf32>, vector<17x153xf32>, vector<8x153xf32> -> vector<8x153xf32>
    %c0_3 = arith.constant 0 : index
    %c0_4 = arith.constant 0 : index
    %3 = vector.load %arg2[%c0_3, %c0_4] : memref<8x9xf32, #tpu.memory_space<vmem>>, vector<8x9xf32>
    %c0_5 = arith.constant 0 : index
    %c0_6 = arith.constant 0 : index
    %4 = vector.load %arg4[%c0_5, %c0_6] : memref<9x153xf32, #tpu.memory_space<vmem>>, vector<9x153xf32>
    %cst_7 = arith.constant dense<0.000000e+00> : vector<8x153xf32>
    %5 = tpu.matmul %3, %4, %cst_7 {dimension_numbers = #tpu.dot_dimension_numbers<[1], [0], [0], [1], [0, 0, 1, 1], [], []>} : vector<8x9xf32>, vector<9x153xf32>, vector<8x153xf32> -> vector<8x153xf32>
    %6 = arith.mulf %5, %2 : vector<8x153xf32>
    %c0_8 = arith.constant 0 : index
    %c0_9 = arith.constant 0 : index
    %7 = vector.load %arg5[%c0_8, %c0_9] : memref<153x128xf32, #tpu.memory_space<vmem>>, vector<153x128xf32>
    %cst_10 = arith.constant dense<0.000000e+00> : vector<8x128xf32>
    %8 = tpu.matmul %6, %7, %cst_10 {dimension_numbers = #tpu.dot_dimension_numbers<[1], [0], [0], [1], [0, 0, 1, 1], [], []>} : vector<8x153xf32>, vector<153x128xf32>, vector<8x128xf32> -> vector<8x128xf32>
    %9 = math.tanh %8 : vector<8x128xf32>
    %c0_11 = arith.constant 0 : index
    %c0_12 = arith.constant 0 : index
    %10 = vector.load %arg6[%c0_11, %c0_12] : memref<8x128xf32, #tpu.memory_space<vmem>>, vector<8x128xf32>
    tpu.vector_store %arg6[%c0_11, %c0_12], %9 {strides = array<i32>} : memref<8x128xf32, #tpu.memory_space<vmem>>, vector<8x128xf32>,
    return
  }
  func.func @transform_0(%arg0: i32) -> (i32, i32) {
    %c0_i32 = arith.constant 0 : i32
    %c0_i32_0 = arith.constant 0 : i32
    %c0_i32_1 = arith.constant 0 : i32
    return %c0_i32, %c0_i32_0 : i32, i32
  }
  func.func @transform_1(%arg0: i32) -> (i32, i32) {
    %c0_i32 = arith.constant 0 : i32
    %c0_i32_0 = arith.constant 0 : i32
    %c0_i32_1 = arith.constant 0 : i32
    return %c0_i32, %c0_i32_0 : i32, i32
  }
  func.func @transform_2(%arg0: i32) -> (i32, i32) {
    %c0_i32 = arith.constant 0 : i32
    %c0_i32_0 = arith.constant 0 : i32
    %c0_i32_1 = arith.constant 0 : i32
    return %c0_i32, %c0_i32_0 : i32, i32
  }
  func.func @transform_3(%arg0: i32) -> (i32, i32) {
    %c0_i32 = arith.constant 0 : i32
    %c0_i32_0 = arith.constant 0 : i32
    %c0_i32_1 = arith.constant 0 : i32
    return %c0_i32, %c0_i32_0 : i32, i32
  }
  func.func @transform_4(%arg0: i32) -> (i32, i32) {
    %c0_i32 = arith.constant 0 : i32
    %c0_i32_0 = arith.constant 0 : i32
    return %c0_i32, %arg0 : i32, i32
  }
  func.func @transform_5(%arg0: i32) -> (i32, i32) {
    %c0_i32 = arith.constant 0 : i32
    %c0_i32_0 = arith.constant 0 : i32
    return %c0_i32, %arg0 : i32, i32
  }
}

</mosaic_0001>

<llo_original>
// kernel: fwd.1
$region0: #{fwd.1}
  #allocation0 [shape = 'u32[]', space=smem, size = 0x4, offset = 0x4, fixed_abs, tag = 'smem constant byte address 0x4 - core index']
  #allocation1 [shape = 'u32[72,128]{1,0:T(1,128)}', space=vmem, size = 0x9000, scoped, tag = 'internal scratch']
  %s0 = inlined_call_operand.vmem [shape: f32[8,17], index: 0, kind: input, shape index: {}]
  %s1 = inlined_call_operand.vmem [shape: f32[8,9], index: 1, kind: input, shape index: {}]
  %s2 = inlined_call_operand.hbm [shape: f32[17,153], index: 2, kind: input, shape index: {}]
  %s3 = inlined_call_operand.hbm [shape: f32[9,153], index: 3, kind: input, shape index: {}]
  %s4 = inlined_call_operand.hbm [shape: f32[153,128], index: 4, kind: input, shape index: {}]
  %s5 = inlined_call_operand.vmem [shape: f32[8,128], index: 5, kind: output, shape index: {}]
  %s6 = sld [smem:[#allocation0]]
  $region42: #{fwd.1} parent=0
    _
  %s8 = ssub.s32 1, %s6
  %s9 = scalar_select 0, %s8, %s6
  $region1: #{fwd.1} parent=0
    #allocation2 [shape = 'u8[24576]{0}', space=vmem, size = 0x6000, scoped, tag = 'input window, operand 2, single buffered']
    #allocation3 [shape = 's32[1]{0}', space=sflag, size = 0x4, scoped, tag = 'scoped memory for fwd.1']
    #allocation4 [shape = 'u8[16384]{0}', space=vmem, size = 0x4000, scoped, tag = 'input window, operand 3, single buffered']
    #allocation5 [shape = 's32[1]{0}', space=sflag, size = 0x4, scoped, tag = 'scoped memory for fwd.1']
    #allocation6 [shape = 'u8[81920]{0}', space=vmem, size = 0x14000, scoped, tag = 'input window, operand 4, single buffered']
    %10 = vsyncpa [#allocation3], 0
    %11 = vsyncpa [#allocation5], 0
    // Predicated region
    $region2: #{fwd.1} parent=1 // pred_check
      _
    $region3: #{fwd.1} parent=1 // pred_check_branch
      %13 = sbr.rel (0) target = $region5
    $region4: #{fwd.1} parent=1 // pred_region
      _
    $region5: #{fwd.1} parent=1 // pred_fallthru
      _
    // Predicated region
    $region6: #{fwd.1} parent=1 // pred_check
      _
    $region7: #{fwd.1} parent=1 // pred_check_branch
      %15 = sbr.rel (0) target = $region9
    $region8: #{fwd.1} parent=1 // pred_region
      _
    $region9: #{fwd.1} parent=1 // pred_fallthru
      _
    // Predicated region
    $region10: #{fwd.1} parent=1 // pred_check
      _
    $region11: #{fwd.1} parent=1 // pred_check_branch
      %17 = sbr.rel (0) target = $region13
    $region12: #{fwd.1} parent=1 // pred_region
      %19 = vsyncadd [#allocation3], 0
      %s20 = sshll.u32 %s2, 4
      %s21 = int_to_ptr.hbm [resolvable:$true] %s20
      %s22 = sshll.u32 [#allocation2], 4
      %s23 = int_to_ptr.vmem [resolvable:$true] %s22
      %28 = dma.hbm_to_vmem [thread:$0]  %s21, 768, %s23, [#allocation3], 256, 256, 16
    $region13: #{fwd.1} parent=1 // pred_fallthru
      _
    // Predicated region
    $region14: #{fwd.1} parent=1 // pred_check
      _
    $region15: #{fwd.1} parent=1 // pred_check_branch
      %30 = sbr.rel (0) target = $region17
    $region16: #{fwd.1} parent=1 // pred_region
      %32 = vsyncadd [#allocation5], 0
      %s33 = sshll.u32 %s3, 4
      %s34 = int_to_ptr.hbm [resolvable:$true] %s33
      %s35 = sshll.u32 [#allocation4], 4
      %s36 = int_to_ptr.vmem [resolvable:$true] %s35
      %41 = dma.hbm_to_vmem [thread:$0]  %s34, 512, %s36, [#allocation5], 256, 256, 16
    $region17: #{fwd.1} parent=1 // pred_fallthru
      _
    // Predicated region
    $region18: #{fwd.1} parent=1 // pred_check
      _
    $region19: #{fwd.1} parent=1 // pred_check_branch
      %43 = sbr.rel (0) target = $region21
    $region20: #{fwd.1} parent=1 // pred_region
      %45 = vsyncadd [#allocation5], 0
      %s46 = sshll.u32 %s4, 4
      %s47 = int_to_ptr.hbm [resolvable:$true] %s46
      %s48 = sshll.u32 [#allocation6], 4
      %s49 = int_to_ptr.vmem [resolvable:$true] %s48
      %54 = dma.hbm_to_vmem [thread:$0]  %s47, 2560, %s49, [#allocation5], 128, 128, 8
    $region21: #{fwd.1} parent=1 // pred_fallthru
      _
    // Predicated region
    $region22: #{fwd.1} parent=1 // pred_check
      _
    $region23: #{fwd.1} parent=1 // pred_check_branch
      %56 = sbr.rel (0) target = $region25
    $region24: #{fwd.1} parent=1 // pred_region
      %58 = dma.done [#allocation3], 768
    $region25: #{fwd.1} parent=1 // pred_fallthru
      _
    // Predicated region
    $region26: #{fwd.1} parent=1 // pred_check
      _
    $region27: #{fwd.1} parent=1 // pred_check_branch
      %60 = sbr.rel (0) target = $region29
    $region28: #{fwd.1} parent=1 // pred_region
      %62 = dma.done [#allocation5], 512
    $region29: #{fwd.1} parent=1 // pred_fallthru
      _
    // Predicated region
    $region30: #{fwd.1} parent=1 // pred_check
      _
    $region31: #{fwd.1} parent=1 // pred_check_branch
      %64 = sbr.rel (0) target = $region33
    $region32: #{fwd.1} parent=1 // pred_region
      %66 = dma.done [#allocation5], 2560
    $region33: #{fwd.1} parent=1 // pred_fallthru
      _
    %v67 = vld [vmem:[%s0] sm:$0xff]
    %v68 = vld [vmem:[#allocation2] sm:$0xff]
    %v69 = vld [vmem:[#allocation2 + $0x8] sm:$0xff]
    %v70 = vld [vmem:[#allocation2 + $0x10] sm:$0xff]
    %v71 = vld [vmem:[#allocation2 + $0x18] sm:$0xff]
    %v72 = vld [vmem:[#allocation2 + $0x20] sm:$0x1]
    %v73 = vld [vmem:[#allocation2 + $0x28] sm:$0x1]
    %vm74 = vcmask 138240
    %v76 = vsel %vm74, %v67, 0
    %vm78 = vcmask 1040384
    %v80 = vsel %vm78, %v72, 0
    %v83 = vsel %vm78, %v73, 0
    %85 = vmatpush.msra.mxu0 0.0
    %86 = vmatpush.msra.mxu0 0.0
    %87 = vmatpush.msra.mxu0 0.0
    %88 = vmatpush.msra.mxu0 0.0
    %89 = vmatpush.msra.mxu0 0.0
    %90 = vmatpush.msra.mxu0 0.0
    %91 = vmatpush.msra.mxu0 0.0
    %92 = vmatpush.msra.mxu0 0.0
    %93 = vmatpush.msra.mxu0 0.0
    %94 = vmatpush.msra.mxu0 0.0
    %95 = vmatpush.msra.mxu0 0.0
    %96 = vmatpush.msra.mxu0 0.0
    %97 = vmatpush.msra.mxu0 0.0
    %98 = vmatpush.msra.mxu0 %v80
    %99 = vmatpush.msra.mxu0 %v70
    %100 = vmatpush.msra.mxu0 %v68
    %101 = vmatmul.f32.gmra.mxu0 %v76
    %v102 = vpop.f32.mrf.mxu0
    %v103 = vadd.f32 0.0, %v102
    %104 = vdwg.mxu0
    %105 = vmatpush.msra.mxu0 0.0
    %106 = vmatpush.msra.mxu0 0.0
    %107 = vmatpush.msra.mxu0 0.0
    %108 = vmatpush.msra.mxu0 0.0
    %109 = vmatpush.msra.mxu0 0.0
    %110 = vmatpush.msra.mxu0 0.0
    %111 = vmatpush.msra.mxu0 0.0
    %112 = vmatpush.msra.mxu0 0.0
    %113 = vmatpush.msra.mxu0 0.0
    %114 = vmatpush.msra.mxu0 0.0
    %115 = vmatpush.msra.mxu0 0.0
    %116 = vmatpush.msra.mxu0 0.0
    %117 = vmatpush.msra.mxu0 0.0
    %118 = vmatpush.msra.mxu0 %v83
    %119 = vmatpush.msra.mxu0 %v71
    %120 = vmatpush.msra.mxu0 %v69
    %121 = vmatmul.f32.gmra.mxu0 %v76
    %v122 = vpop.f32.mrf.mxu0
    %v123 = vadd.f32 0.0, %v122
    %124 = vdwg.mxu0
    %v125 = vld [vmem:[%s1] sm:$0xff]
    %v126 = vld [vmem:[#allocation4] sm:$0xff]
    %v127 = vld [vmem:[#allocation4 + $0x8] sm:$0xff]
    %v128 = vld [vmem:[#allocation4 + $0x10] sm:$0x1]
    %v129 = vld [vmem:[#allocation4 + $0x18] sm:$0x1]
    %vm130 = vcmask 72704
    %v132 = vsel %vm130, %v125, 0
    %v135 = vsel %vm78, %v128, 0
    %v138 = vsel %vm78, %v129, 0
    %140 = vmatpush.msra.mxu0 0.0
    %141 = vmatpush.msra.mxu0 0.0
    %142 = vmatpush.msra.mxu0 0.0
    %143 = vmatpush.msra.mxu0 0.0
    %144 = vmatpush.msra.mxu0 0.0
    %145 = vmatpush.msra.mxu0 0.0
    %146 = vmatpush.msra.mxu0 0.0
    %147 = vmatpush.msra.mxu0 0.0
    %148 = vmatpush.msra.mxu0 0.0
    %149 = vmatpush.msra.mxu0 0.0
    %150 = vmatpush.msra.mxu0 0.0
    %151 = vmatpush.msra.mxu0 0.0
    %152 = vmatpush.msra.mxu0 0.0
    %153 = vmatpush.msra.mxu0 0.0
    %154 = vmatpush.msra.mxu0 %v135
    %155 = vmatpush.msra.mxu0 %v126
    %156 = vmatmul.f32.gmra.mxu0 %v132
    %v157 = vpop.f32.mrf.mxu0
    %v158 = vadd.f32 0.0, %v157
    %159 = vdwg.mxu0
    %160 = vmatpush.msra.mxu0 0.0
    %161 = vmatpush.msra.mxu0 0.0
    %162 = vmatpush.msra.mxu0 0.0
    %163 = vmatpush.msra.mxu0 0.0
    %164 = vmatpush.msra.mxu0 0.0
    %165 = vmatpush.msra.mxu0 0.0
    %166 = vmatpush.msra.mxu0 0.0
    %167 = vmatpush.msra.mxu0 0.0
    %168 = vmatpush.msra.mxu0 0.0
    %169 = vmatpush.msra.mxu0 0.0
    %170 = vmatpush.msra.mxu0 0.0
    %171 = vmatpush.msra.mxu0 0.0
    %172 = vmatpush.msra.mxu0 0.0
    %173 = vmatpush.msra.mxu0 0.0
    %174 = vmatpush.msra.mxu0 %v138
    %175 = vmatpush.msra.mxu0 %v127
    %176 = vmatmul.f32.gmra.mxu0 %v132
    %v177 = vpop.f32.mrf.mxu0
    %v178 = vadd.f32 0.0, %v177
    %179 = vdwg.mxu0
    %v180 = vmul.f32 %v158, %v103
    %v181 = vmul.f32 %v178, %v123
    %v182 = vld [vmem:[#allocation6] sm:$0xff]
    %v183 = vld [vmem:[#allocation6 + $0x8] sm:$0xff]
    %v184 = vld [vmem:[#allocation6 + $0x10] sm:$0xff]
    %v185 = vld [vmem:[#allocation6 + $0x18] sm:$0xff]
    %v186 = vld [vmem:[#allocation6 + $0x20] sm:$0xff]
    %v187 = vld [vmem:[#allocation6 + $0x28] sm:$0xff]
    %v188 = vld [vmem:[#allocation6 + $0x30] sm:$0xff]
    %v189 = vld [vmem:[#allocation6 + $0x38] sm:$0xff]
    %v190 = vld [vmem:[#allocation6 + $0x40] sm:$0xff]
    %v191 = vld [vmem:[#allocation6 + $0x48] sm:$0xff]
    %v192 = vld [vmem:[#allocation6 + $0x50] sm:$0xff]
    %v193 = vld [vmem:[#allocation6 + $0x58] sm:$0xff]
    %v194 = vld [vmem:[#allocation6 + $0x60] sm:$0xff]
    %v195 = vld [vmem:[#allocation6 + $0x68] sm:$0xff]
    %v196 = vld [vmem:[#allocation6 + $0x70] sm:$0xff]
    %v197 = vld [vmem:[#allocation6 + $0x78] sm:$0xff]
    %v198 = vld [vmem:[#allocation6 + $0x80] sm:$0xff]
    %v199 = vld [vmem:[#allocation6 + $0x88] sm:$0xff]
    %v200 = vld [vmem:[#allocation6 + $0x90] sm:$0xff]
    %v201 = vld [vmem:[#allocation6 + $0x98] sm:$0x1]
    %vm202 = vcmask 203776
    %v204 = vsel %vm202, %v181, 0
    %v207 = vsel %vm78, %v201, 0
    %209 = vmatpush.msra.mxu0 %v197
    %210 = vmatpush.msra.mxu0 %v196
    %211 = vmatpush.msra.mxu0 %v195
    %212 = vmatpush.msra.mxu0 %v194
    %213 = vmatpush.msra.mxu0 %v193
    %214 = vmatpush.msra.mxu0 %v192
    %215 = vmatpush.msra.mxu0 %v191
    %216 = vmatpush.msra.mxu0 %v190
    %217 = vmatpush.msra.mxu0 %v189
    %218 = vmatpush.msra.mxu0 %v188
    %219 = vmatpush.msra.mxu0 %v187
    %220 = vmatpush.msra.mxu0 %v186
    %221 = vmatpush.msra.mxu0 %v185
    %222 = vmatpush.msra.mxu0 %v184
    %223 = vmatpush.msra.mxu0 %v183
    %224 = vmatpush.msra.mxu0 %v182
    %225 = vmatmul.f32.gmra.mxu0 %v180
    %v226 = vpop.f32.mrf.mxu0
    %v227 = vadd.f32 0.0, %v226
    %228 = vdwg.mxu0
    %229 = vmatpush.msra.mxu0 0.0
    %230 = vmatpush.msra.mxu0 0.0
    %231 = vmatpush.msra.mxu0 0.0
    %232 = vmatpush.msra.mxu0 0.0
    %233 = vmatpush.msra.mxu0 0.0
    %234 = vmatpush.msra.mxu0 0.0
    %235 = vmatpush.msra.mxu0 0.0
    %236 = vmatpush.msra.mxu0 0.0
    %237 = vmatpush.msra.mxu0 0.0
    %238 = vmatpush.msra.mxu0 0.0
    %239 = vmatpush.msra.mxu0 0.0
    %240 = vmatpush.msra.mxu0 0.0
    %241 = vmatpush.msra.mxu0 %v207
    %242 = vmatpush.msra.mxu0 %v200
    %243 = vmatpush.msra.mxu0 %v199
    %244 = vmatpush.msra.mxu0 %v198
    %245 = vmatmul.f32.gmra.mxu0 %v204
    %v246 = vpop.f32.mrf.mxu0
    %v247 = vadd.f32 %v227, %v246
    %248 = vdwg.mxu0
    %v249 = vtanh.pop %v247
    %250 = vst [vmem:[%s5] sm:$0xff] %v249
    // Predicated region
    $region34: #{fwd.1} parent=1 // pred_check
      _
    $region35: #{fwd.1} parent=1 // pred_check_branch
      %252 = sbr.rel (0) target = $region37
    $region36: #{fwd.1} parent=1 // pred_region
      _
    $region37: #{fwd.1} parent=1 // pred_fallthru
      _
    // Predicated region
    $region38: #{fwd.1} parent=1 // pred_check
      _
    $region39: #{fwd.1} parent=1 // pred_check_branch
      %254 = sbr.rel (0) target = $region41
    $region40: #{fwd.1} parent=1 // pred_region
      _
    $region41: #{fwd.1} parent=1 // pred_fallthru
      _
    %255 = vsyncpa [#allocation3], 1
    %256 = vsyncpa [#allocation5], 1

</llo_original>
